<compile_context>
chip_gen: v7x
topology: tpu7x:2x2x1
jax: 0.10.0
libtpu: 0.0.40
codegen_flags: <defaults>
</compile_context>

<pallas_src>
import math
from functools import partial

import numpy as np
import jax
import jax.numpy as jnp
from jax.experimental import pallas as pl
from jax.experimental.pallas import tpu as pltpu


# ---------------------------------------------------------------------------
# Host-side schedule construction (mirrors make_beta_schedule + register_schedule).
# ---------------------------------------------------------------------------
def make_beta_schedule(schedule, n_timestep, linear_start=1e-4, linear_end=2e-2,
                       cosine_s=8e-3):
    if schedule == "linear":
        betas = np.linspace(linear_start ** 0.5, linear_end ** 0.5, n_timestep,
                            dtype=np.float64) ** 2
    elif schedule == "cosine":
        ts = np.arange(n_timestep + 1, dtype=np.float64) / n_timestep + cosine_s
        alphas = np.cos(ts / (1 + cosine_s) * math.pi / 2) ** 2
        alphas = alphas / alphas[0]
        betas = 1.0 - alphas[1:] / alphas[:-1]
        betas = np.clip(betas, a_min=0.0, a_max=0.999)
    elif schedule == "sqrt_linear":
        betas = np.linspace(linear_start, linear_end, n_timestep, dtype=np.float64)
    elif schedule == "sqrt":
        betas = np.linspace(linear_start, linear_end, n_timestep,
                            dtype=np.float64) ** 0.5
    else:
        raise ValueError(f"schedule '{schedule}' unknown.")
    return betas


# ---------------------------------------------------------------------------
# Pallas kernel: q_sample over the whole (B, C*H*W) slab in one grid step.
# ---------------------------------------------------------------------------
def _q_sample_kernel(t_ref, sac_ref, som_ref,      # SMEM (scalar-prefetch) refs
                     x_ref, noise_ref,             # VMEM inputs  (B, N)
                     o_ref):                       # VMEM output  (B, N)
    b_count = x_ref.shape[0]
    for b in range(b_count):                       # static unroll over tiny batch
        tb = t_ref[b]                              # scalar int32 from SMEM
        a = sac_ref[tb]                            # sqrt_alphas_cumprod[t_b]
        s = som_ref[tb]                            # sqrt_one_minus_alphas_cumprod[t_b]
        # lane-dense (1, N) rows; N % 128 == 0 -> unmasked full-vreg stores
        o_ref[pl.ds(b, 1), :] = (a * x_ref[pl.ds(b, 1), :]
                                 + s * noise_ref[pl.ds(b, 1), :])


def q_sample_pallas(sqrt_alphas_cumprod, sqrt_one_minus_alphas_cumprod,
                    x_start, t, noise):
    orig_shape = x_start.shape
    b_count = orig_shape[0]
    n_elem = int(np.prod(orig_shape[1:]))          # C*H*W (1024 here, multiple of 128)

    x_flat = x_start.reshape(b_count, n_elem).astype(jnp.float32)
    n_flat = noise.reshape(b_count, n_elem).astype(jnp.float32)
    t_i32 = t.astype(jnp.int32)

    grid_spec = pltpu.PrefetchScalarGridSpec(
        num_scalar_prefetch=3,                     # t, sqrt_ac, sqrt_1m_ac -> SMEM
        grid=(1,),                                 # single step: no per-batch loop overhead
        in_specs=[
            pl.BlockSpec((b_count, n_elem), lambda i, *_: (0, 0)),   # x
            pl.BlockSpec((b_count, n_elem), lambda i, *_: (0, 0)),   # noise
        ],
        out_specs=pl.BlockSpec((b_count, n_elem), lambda i, *_: (0, 0)),
    )

    out_flat = pl.pallas_call(
        _q_sample_kernel,
        out_shape=jax.ShapeDtypeStruct((b_count, n_elem), jnp.float32),
        grid_spec=grid_spec,
        compiler_params=pltpu.CompilerParams(
            dimension_semantics=("arbitrary",)),
    )(t_i32, sqrt_alphas_cumprod, sqrt_one_minus_alphas_cumprod, x_flat, n_flat)

    return out_flat.reshape(orig_shape)


# ---------------------------------------------------------------------------
# Module wrapper: faithful reproduction of sd_noise_scheduler.
# ---------------------------------------------------------------------------
class SDNoiseSchedulerPallas:
    def __init__(self, parameterization="eps", v_posterior=0.0, given_betas=None,
                 beta_schedule="linear", timesteps=1000,
                 linear_start=0.00085, linear_end=0.012, cosine_s=0.008):
        assert parameterization in ("eps", "x0")
        self.parameterization = parameterization
        self.v_posterior = v_posterior
        self._register_schedule(given_betas, beta_schedule, timesteps,
                                linear_start, linear_end, cosine_s)

    def _register_schedule(self, given_betas, beta_schedule, timesteps,
                           linear_start, linear_end, cosine_s):
        if given_betas is not None:
            betas = np.asarray(given_betas, dtype=np.float64)
        else:
            betas = make_beta_schedule(beta_schedule, timesteps,
                                       linear_start=linear_start,
                                       linear_end=linear_end, cosine_s=cosine_s)
        alphas = 1.0 - betas
        alphas_cumprod = np.cumprod(alphas, axis=0)
        alphas_cumprod_prev = np.append(1.0, alphas_cumprod[:-1])
        self.num_timesteps = int(betas.shape[0])
        self.linear_start = linear_start
        self.linear_end = linear_end

        # host-side buffers (numpy), as in register_schedule
        self.betas = betas.astype(np.float32)
        self.alphas_cumprod = alphas_cumprod.astype(np.float32)
        self.alphas_cumprod_prev = alphas_cumprod_prev.astype(np.float32)
        with np.errstate(divide="ignore", invalid="ignore"):
            posterior_variance = ((1 - self.v_posterior) * betas
                                  * (1.0 - alphas_cumprod_prev)
                                  / (1.0 - alphas_cumprod)
                                  + self.v_posterior * betas)
            self.posterior_variance = posterior_variance.astype(np.float32)
            self.posterior_log_variance_clipped = np.log(
                np.maximum(posterior_variance, 1e-20)).astype(np.float32)
            self.posterior_mean_coef1 = (betas * np.sqrt(alphas_cumprod_prev)
                                         / (1.0 - alphas_cumprod)).astype(np.float32)
            self.posterior_mean_coef2 = ((1.0 - alphas_cumprod_prev) * np.sqrt(alphas)
                                         / (1.0 - alphas_cumprod)).astype(np.float32)
            if self.parameterization == "eps":
                lvlb = betas ** 2 / (2 * posterior_variance * alphas
                                     * (1 - alphas_cumprod))
            else:  # x0
                lvlb = 0.5 * np.sqrt(alphas_cumprod) / (2.0 * 1 - alphas_cumprod)
        lvlb[0] = lvlb[1]
        self.lvlb_weights = lvlb.astype(np.float32)
        assert not np.isnan(self.lvlb_weights).all()

        # device buffers used by forward()
        self.sqrt_alphas_cumprod = jnp.asarray(
            np.sqrt(alphas_cumprod), dtype=jnp.float32)
        self.sqrt_one_minus_alphas_cumprod = jnp.asarray(
            np.sqrt(1.0 - alphas_cumprod), dtype=jnp.float32)

    def __call__(self, x_start, t, noise=None, *, rng=None):
        if noise is None:
            # torch.randn_like default -> host-side jax.random (RNG stays outside
            # the kernel; the FMA itself is inside the Pallas kernel).
            assert rng is not None, "provide `noise` or an `rng` key"
            noise = jax.random.normal(rng, x_start.shape, x_start.dtype)
        return q_sample_pallas(self.sqrt_alphas_cumprod,
                               self.sqrt_one_minus_alphas_cumprod,
                               x_start, t, noise)


# ---------------------------------------------------------------------------
# Demo / self-check.
# ---------------------------------------------------------------------------
if __name__ == "__main__":
    B, C, H, W = 2, 4, 16, 16

    root = jax.random.PRNGKey(0)
    k_x, k_t, k_n = jax.random.split(root, 3)

    x_start = jax.random.normal(k_x, (B, C, H, W), jnp.float32)
    t = jax.random.randint(k_t, (B,), 0, 1000)
    noise = jax.random.normal(k_n, (B, C, H, W), jnp.float32)

    sched = SDNoiseSchedulerPallas()          # default: eps / linear / 1000 steps
    out = sched(x_start, t, noise)
    jax.block_until_ready(out)
    assert out.shape == (B, C, H, W), out.shape

    # pure-JAX reference (extract_into_tensor semantics)
    a = sched.sqrt_alphas_cumprod[t].reshape(B, 1, 1, 1)
    s = sched.sqrt_one_minus_alphas_cumprod[t].reshape(B, 1, 1, 1)
    ref = a * x_start + s * noise
    np.testing.assert_allclose(np.asarray(out), np.asarray(ref),
                               rtol=1e-6, atol=1e-6)

    print("KERNEL_OK")
</pallas_src>

<mosaic_0001>
module attributes {stable_mosaic.version = 11 : i64} {
  func.func @_q_sample_kernel(%arg0: i32, %arg1: memref<2xi32, #tpu.memory_space<smem>>, %arg2: memref<1000xf32, #tpu.memory_space<smem>>, %arg3: memref<1000xf32, #tpu.memory_space<smem>>, %arg4: memref<2x1024xf32, #tpu.memory_space<vmem>>, %arg5: memref<2x1024xf32, #tpu.memory_space<vmem>>, %arg6: memref<2x1024xf32, #tpu.memory_space<vmem>>) attributes {dimension_semantics = [#tpu.dimension_semantics<arbitrary>], iteration_bounds = array<i64: 1>, scalar_prefetch = 3 : i64, scratch_operands = 0 : i64, tpu.core_type = #tpu.core_type<tc>, window_params = [{pipeline_mode = #tpu.pipeline_mode<synchronous>, transform_indices = @transform_0, window_bounds = array<i64: 2, 1024>}, {pipeline_mode = #tpu.pipeline_mode<synchronous>, transform_indices = @transform_1, window_bounds = array<i64: 2, 1024>}, {pipeline_mode = #tpu.pipeline_mode<synchronous>, transform_indices = @transform_2, window_bounds = array<i64: 2, 1024>}]} {
    %c0 = arith.constant 0 : index
    %0 = memref.load %arg1[%c0] : memref<2xi32, #tpu.memory_space<smem>>
    %1 = arith.index_cast %0 : i32 to index
    %2 = memref.load %arg2[%1] : memref<1000xf32, #tpu.memory_space<smem>>
    %3 = arith.index_cast %0 : i32 to index
    %4 = memref.load %arg3[%3] : memref<1000xf32, #tpu.memory_space<smem>>
    %c0_0 = arith.constant 0 : index
    %c0_1 = arith.constant 0 : index
    %5 = vector.load %arg4[%c0_0, %c0_1] : memref<2x1024xf32, #tpu.memory_space<vmem>>, vector<1x1024xf32>
    %6 = vector.broadcast %2 : f32 to vector<1x1024xf32>
    %7 = arith.mulf %6, %5 : vector<1x1024xf32>
    %c0_2 = arith.constant 0 : index
    %c0_3 = arith.constant 0 : index
    %8 = vector.load %arg5[%c0_2, %c0_3] : memref<2x1024xf32, #tpu.memory_space<vmem>>, vector<1x1024xf32>
    %9 = vector.broadcast %4 : f32 to vector<1x1024xf32>
    %10 = arith.mulf %9, %8 : vector<1x1024xf32>
    %11 = arith.addf %7, %10 : vector<1x1024xf32>
    %c0_4 = arith.constant 0 : index
    %c0_5 = arith.constant 0 : index
    %12 = vector.load %arg6[%c0_4, %c0_5] : memref<2x1024xf32, #tpu.memory_space<vmem>>, vector<1x1024xf32>
    tpu.vector_store %arg6[%c0_4, %c0_5], %11 {strides = array<i32>} : memref<2x1024xf32, #tpu.memory_space<vmem>>, vector<1x1024xf32>,
    %c1 = arith.constant 1 : index
    %13 = memref.load %arg1[%c1] : memref<2xi32, #tpu.memory_space<smem>>
    %14 = arith.index_cast %13 : i32 to index
    %15 = memref.load %arg2[%14] : memref<1000xf32, #tpu.memory_space<smem>>
    %16 = arith.index_cast %13 : i32 to index
    %17 = memref.load %arg3[%16] : memref<1000xf32, #tpu.memory_space<smem>>
    %c1_6 = arith.constant 1 : index
    %c0_7 = arith.constant 0 : index
    %18 = vector.load %arg4[%c1_6, %c0_7] : memref<2x1024xf32, #tpu.memory_space<vmem>>, vector<1x1024xf32>
    %19 = vector.broadcast %15 : f32 to vector<1x1024xf32>
    %20 = arith.mulf %19, %18 : vector<1x1024xf32>
    %c1_8 = arith.constant 1 : index
    %c0_9 = arith.constant 0 : index
    %21 = vector.load %arg5[%c1_8, %c0_9] : memref<2x1024xf32, #tpu.memory_space<vmem>>, vector<1x1024xf32>
    %22 = vector.broadcast %17 : f32 to vector<1x1024xf32>
    %23 = arith.mulf %22, %21 : vector<1x1024xf32>
    %24 = arith.addf %20, %23 : vector<1x1024xf32>
    %c1_10 = arith.constant 1 : index
    %c0_11 = arith.constant 0 : index
    %25 = vector.load %arg6[%c1_10, %c0_11] : memref<2x1024xf32, #tpu.memory_space<vmem>>, vector<1x1024xf32>
    tpu.vector_store %arg6[%c1_10, %c0_11], %24 {strides = array<i32>} : memref<2x1024xf32, #tpu.memory_space<vmem>>, vector<1x1024xf32>,
    return
  }
  func.func @transform_0(%arg0: i32, %arg1: memref<2xi32, #tpu.memory_space<smem>>, %arg2: memref<1000xf32, #tpu.memory_space<smem>>, %arg3: memref<1000xf32, #tpu.memory_space<smem>>) -> (i32, i32) {
    %c0_i32 = arith.constant 0 : i32
    %c0_i32_0 = arith.constant 0 : i32
    %c0_i32_1 = arith.constant 0 : i32
    return %c0_i32, %c0_i32_0 : i32, i32
  }
  func.func @transform_1(%arg0: i32, %arg1: memref<2xi32, #tpu.memory_space<smem>>, %arg2: memref<1000xf32, #tpu.memory_space<smem>>, %arg3: memref<1000xf32, #tpu.memory_space<smem>>) -> (i32, i32) {
    %c0_i32 = arith.constant 0 : i32
    %c0_i32_0 = arith.constant 0 : i32
    %c0_i32_1 = arith.constant 0 : i32
    return %c0_i32, %c0_i32_0 : i32, i32
  }
  func.func @transform_2(%arg0: i32, %arg1: memref<2xi32, #tpu.memory_space<smem>>, %arg2: memref<1000xf32, #tpu.memory_space<smem>>, %arg3: memref<1000xf32, #tpu.memory_space<smem>>) -> (i32, i32) {
    %c0_i32 = arith.constant 0 : i32
    %c0_i32_0 = arith.constant 0 : i32
    %c0_i32_1 = arith.constant 0 : i32
    return %c0_i32, %c0_i32_0 : i32, i32
  }
}

</mosaic_0001>

<llo_original>
// kernel: tpu_custom_call.1
$region0: #{tpu_custom_call.1}
  #allocation0 [shape = 'u32[]', space=smem, size = 0x4, offset = 0x4, fixed_abs, tag = 'smem constant byte address 0x4 - core index']
  #allocation1 [shape = 'u32[144,128]{1,0:T(1,128)}', space=vmem, size = 0x12000, scoped, tag = 'internal scratch']
  #allocation2 [shape = 's32[1]{0}', space=sflag, size = 0x4, scoped, tag = 'scoped memory for tpu_custom_call.1']
  #allocation3 [shape = 'u8[512]{0}', space=smem, size = 0x200, scoped, tag = 'prefetched SMEM operand 0']
  #allocation4 [shape = 'u8[4096]{0}', space=smem, size = 0x1000, scoped, tag = 'prefetched SMEM operand 1']
  #allocation5 [shape = 'u8[4096]{0}', space=smem, size = 0x1000, scoped, tag = 'prefetched SMEM operand 2']
  %s0 = inlined_call_operand.hbm [shape: s32[2], index: 0, kind: input, shape index: {}]
  %s1 = inlined_call_operand.hbm [shape: f32[1000], index: 1, kind: input, shape index: {}]
  %s2 = inlined_call_operand.hbm [shape: f32[1000], index: 2, kind: input, shape index: {}]
  %s3 = inlined_call_operand.hbm [shape: f32[2,1024], index: 3, kind: input, shape index: {}]
  %s4 = inlined_call_operand.hbm [shape: f32[2,1024], index: 4, kind: input, shape index: {}]
  %s5 = inlined_call_operand.hbm [shape: f32[2,1024], index: 5, kind: output, shape index: {}]
  %s6 = sld [smem:[#allocation0]]
  $region26: #{tpu_custom_call.1} parent=0
    _
  %s8 = ssub.s32 1, %s6
  %s9 = scalar_select 0, %s8, %s6
  %11 = dma.hbm_to_smem %s0, 16, [#allocation3], [#allocation2]
  %13 = dma.hbm_to_smem %s1, 128, [#allocation4], [#allocation2]
  %15 = dma.hbm_to_smem %s2, 128, [#allocation5], [#allocation2]
  %16 = dma.done [#allocation2], 272
  %17 = sfence
  $region1: #{tpu_custom_call.1} parent=0
    #allocation6 [shape = 'u8[8192]{0}', space=vmem, size = 0x2000, scoped, tag = 'input window, operand 3, single buffered']
    #allocation7 [shape = 's32[1]{0}', space=sflag, size = 0x4, scoped, tag = 'scoped memory for tpu_custom_call.1']
    #allocation8 [shape = 's32[1]{0}', space=sflag, size = 0x4, scoped, tag = 'scoped memory for tpu_custom_call.1']
    #allocation9 [shape = 'u8[8192]{0}', space=vmem, size = 0x2000, scoped, tag = 'input window, operand 4, single buffered']
    #allocation10 [shape = 's32[1]{0}', space=sflag, size = 0x4, scoped, tag = 'scoped memory for tpu_custom_call.1']
    #allocation11 [shape = 'u8[8192]{0}', space=vmem, size = 0x2000, scoped, tag = 'output window, operand 0, single buffered']
    %18 = vsyncpa [#allocation7], 0
    %19 = vsyncpa [#allocation10], 0
    %20 = vsyncpa [#allocation8], 0
    // Predicated region
    $region2: #{tpu_custom_call.1} parent=1 // pred_check
      _
    $region3: #{tpu_custom_call.1} parent=1 // pred_check_branch
      %22 = sbr.rel (0) target = $region5
    $region4: #{tpu_custom_call.1} parent=1 // pred_region
      %s24 = ssub.s32 256, 256
      %25 = vsyncadd [#allocation7], %s24
      %s27 = sshll.u32 [#allocation6], 4
      %s28 = int_to_ptr.vmem [resolvable:$true] %s27
      %30 = dma.hbm_to_vmem [thread:$0]  %s3, 256, %s28, [#allocation7]
    $region5: #{tpu_custom_call.1} parent=1 // pred_fallthru
      _
    // Predicated region
    $region6: #{tpu_custom_call.1} parent=1 // pred_check
      _
    $region7: #{tpu_custom_call.1} parent=1 // pred_check_branch
      %32 = sbr.rel (0) target = $region9
    $region8: #{tpu_custom_call.1} parent=1 // pred_region
      %s34 = ssub.s32 256, 256
      %35 = vsyncadd [#allocation10], %s34
      %s37 = sshll.u32 [#allocation9], 4
      %s38 = int_to_ptr.vmem [resolvable:$true] %s37
      %40 = dma.hbm_to_vmem [thread:$0]  %s4, 256, %s38, [#allocation10]
    $region9: #{tpu_custom_call.1} parent=1 // pred_fallthru
      _
    // Predicated region
    $region10: #{tpu_custom_call.1} parent=1 // pred_check
      _
    $region11: #{tpu_custom_call.1} parent=1 // pred_check_branch
      %42 = sbr.rel (0) target = $region13
    $region12: #{tpu_custom_call.1} parent=1 // pred_region
      %43 = dma.done [#allocation7], 256
    $region13: #{tpu_custom_call.1} parent=1 // pred_fallthru
      _
    // Predicated region
    $region14: #{tpu_custom_call.1} parent=1 // pred_check
      _
    $region15: #{tpu_custom_call.1} parent=1 // pred_check_branch
      %45 = sbr.rel (0) target = $region17
    $region16: #{tpu_custom_call.1} parent=1 // pred_region
      %46 = dma.done [#allocation10], 256
    $region17: #{tpu_custom_call.1} parent=1 // pred_fallthru
      _
    %s47 = sld [smem:[#allocation3]]
    %s48 = sld [smem:[#allocation4 + %s47]]
    %s49 = sld [smem:[#allocation5 + %s47]]
    %v50 = vld [vmem:[#allocation6] ss:$2 sm:$0xff]
    %v51 = vstv %s48
    %v52 = vmul.f32 %v51, %v50
    %v53 = vld [vmem:[#allocation9] ss:$2 sm:$0xff]
    %v54 = vstv %s49
    %v55 = vmul.f32 %v54, %v53
    %v56 = vadd.f32 %v52, %v55
    %57 = vst [vmem:[#allocation11] ss:$2 sm:$0xff] %v56
    %s58 = sld [smem:[#allocation3 + $0x1]]
    %s59 = sld [smem:[#allocation4 + %s58]]
    %s60 = sld [smem:[#allocation5 + %s58]]
    %s61 = scalar_lea.vmem [#allocation6], 1
    %v62 = vld [vmem:[%s61] ss:$2 sm:$0xff]
    %v63 = vstv %s59
    %v64 = vmul.f32 %v63, %v62
    %s65 = scalar_lea.vmem [#allocation9], 1
    %v66 = vld [vmem:[%s65] ss:$2 sm:$0xff]
    %v67 = vstv %s60
    %v68 = vmul.f32 %v67, %v66
    %v69 = vadd.f32 %v64, %v68
    %s70 = scalar_lea.vmem [#allocation11], 1
    %71 = vst [vmem:[%s70] ss:$2 sm:$0xff] %v69
    // Predicated region
    $region18: #{tpu_custom_call.1} parent=1 // pred_check
      _
    $region19: #{tpu_custom_call.1} parent=1 // pred_check_branch
      %73 = sbr.rel (0) target = $region21
    $region20: #{tpu_custom_call.1} parent=1 // pred_region
      %s75 = ssub.s32 256, 256
      %76 = vsyncadd [#allocation8], %s75
      %s78 = sshll.u32 [#allocation11], 4
      %s79 = int_to_ptr.vmem [resolvable:$true] %s78
      %81 = dma.vmem_to_hbm [thread:$0]  %s79, 256, %s5, [#allocation8]
    $region21: #{tpu_custom_call.1} parent=1 // pred_fallthru
      _
    // Predicated region
    $region22: #{tpu_custom_call.1} parent=1 // pred_check
      _
    $region23: #{tpu_custom_call.1} parent=1 // pred_check_branch
      %83 = sbr.rel (0) target = $region25
    $region24: #{tpu_custom_call.1} parent=1 // pred_region
      %84 = dma.done [#allocation8], 256
    $region25: #{tpu_custom_call.1} parent=1 // pred_fallthru
      _
    %85 = vsyncpa [#allocation7], 1
    %86 = vsyncpa [#allocation10], 1
    %87 = vsyncpa [#allocation8], 1

</llo_original>
